<compile_context>
chip_gen: v7x
topology: tpu7x:2x2x1
jax: 0.10.0
libtpu: 0.0.40
codegen_flags: <defaults>
</compile_context>

<pallas_src>
import math

import numpy as np

import jax
import jax.numpy as jnp
from jax.experimental import pallas as pl
from jax.experimental.pallas import tpu as pltpu


def _ratio_mul_xy_edge_kernel(vals_ref, s_sel_ref, w_ref, consts_ref, o_ref):
    """One row-tile of the fused PE + Linear + ratio multiply.

    vals_ref   : (TM, P*F)   f32  -- P logical `values` rows packed per row
    s_sel_ref  : (P*F, 2*L)  f32  -- [:, :L] x/y select * PE freq, [:, L:] ratio
    w_ref      : (L, L)      bf16 -- blockdiag of (W.T / sqrt(C/2)), P copies
    consts_ref : (2, L)      f32  -- row 0: sin/cos phase, row 1: bias (tiled)
    o_ref      : (TM, L)     bf16 (or f32)
    """
    L = o_ref.shape[-1]
    vals = vals_ref[...]

    # One small f32 MXU matmul builds both the PE argument and the ratio.
    sel = jnp.dot(vals, s_sel_ref[...], preferred_element_type=jnp.float32)
    arg = sel[:, :L]                       # coordinate * frequency per lane
    ratio = sel[:, L:] + 0.5               # (values[:, 1] + 1) / 2, broadcast

    # even channels: sin(arg); odd channels: cos(arg) = sin(arg + pi/2)
    pe = jnp.sin(arg + consts_ref[0:1, :])

    # nn.Linear with 1/sqrt(C/2) pre-folded: pe @ blockdiag(W.T/sqrt(C/2)) + b
    out = jnp.dot(pe.astype(w_ref.dtype), w_ref[...],
                  preferred_element_type=jnp.float32)
    out = out + consts_ref[1:2, :]

    o_ref[...] = (out * ratio).astype(o_ref.dtype)


def ratio_mul_xy_edge_enc(values, weight, bias, out_dim, *,
                          block_rows=4096, out_dtype=jnp.bfloat16):
    """Pallas implementation of RatioMulXyEdgeEnc.forward.

    values: (N, F) with F >= 4 (col 1 = ratio src, cols 2:4 = x, y)
    weight: (C, C) nn.Linear weight (PyTorch convention: out = x @ W.T + b)
    bias:   (C,)
    returns e: (N, C) in out_dtype (bf16 by default; pass jnp.float32 for
               exact dtype parity with the PyTorch module).
    """
    C = int(out_dim)
    values = values.astype(jnp.float32)
    N, F = values.shape
    Cp = (C + 1) // 2

    # ---- lane packing: P logical rows of group width G (>= C, G | 128) ------
    if C <= 128:
        G = int(pl.next_power_of_2(C))          # group width, divides 128
        P = 128 // G
    else:
        G = int(pl.cdiv(C, 128)) * 128
        P = 1
    L = P * G                                   # packed lane width (>= 128)
    FP = P * F                                  # packed feature width

    # ---- per-output-column constants (host side, tiny) ----------------------
    j = np.arange(C)
    k = np.where(j < Cp, j, j - Cp)             # channel within its x / y block
    freq = np.exp(-2.0 * (k // 2) * (math.log(10000.0) / Cp)).astype(np.float32)
    phase = ((k % 2) * (math.pi / 2.0)).astype(np.float32)   # cos = sin(.+pi/2)
    src_col = np.where(j < Cp, 2, 3).astype(np.int64)        # x col vs y col

    # Fused selection matrix: packed values row -> [arg lanes | ratio lanes].
    s_sel = np.zeros((FP, 2 * L), np.float32)
    phase_row = np.zeros((L,), np.float32)
    for p in range(P):
        s_sel[p * F + src_col, p * G + j] = freq             # freq folded in
        s_sel[p * F + 1, L + p * G + j] = 0.5                # (v1 + 1) / 2
        phase_row[p * G + j] = phase

    inv_scale = 1.0 / math.sqrt(C / 2.0)
    wt_g = jnp.zeros((G, G), jnp.float32).at[:C, :C].set(
        weight.astype(jnp.float32).T * inv_scale)            # zero-padded lanes
    w_big = jnp.kron(jnp.eye(P, dtype=jnp.float32), wt_g).astype(jnp.bfloat16)

    bias_g = jnp.zeros((G,), jnp.float32).at[:C].set(bias.astype(jnp.float32))
    consts = jnp.stack([jnp.asarray(phase_row), jnp.tile(bias_g, P)], axis=0)

    # ---- pack P logical rows per physical row ((N,F) row-major == (N/P,P*F)) -
    n_phys = int(pl.cdiv(N, P))
    if n_phys * P != N:
        # TODO(synk): tiny (<= P-1 row) input pad copy; avoidable with a flat DMA.
        values = jnp.pad(values, ((0, n_phys * P - N), (0, 0)))
    vals_packed = values.reshape(n_phys, FP)        # free when N % P == 0

    # ---- row tile: multiple of 16 (bf16 sublane tile) or the full extent ----
    block_rows = max(16, (int(block_rows) // 16) * 16)
    if n_phys > block_rows:
        tm = block_rows
    elif n_phys >= 512:
        # >= 2 grid steps so a v7x megacore can shard the row axis.
        tm = int(pl.cdiv(int(pl.cdiv(n_phys, 2)), 16)) * 16
    else:
        tm = n_phys                                 # single full-extent block
    grid = (int(pl.cdiv(n_phys, tm)),)              # partial last block masked

    out_itemsize = jnp.dtype(out_dtype).itemsize
    cost = pl.CostEstimate(
        flops=int(n_phys) * (2 * FP * 2 * L + 2 * L * L + 6 * L),
        transcendentals=int(n_phys) * L,
        bytes_accessed=int(n_phys) * (FP * 4 + L * out_itemsize)
        + FP * 2 * L * 4 + L * L * 2 + 2 * L * 4,
    )

    out_packed = pl.pallas_call(
        _ratio_mul_xy_edge_kernel,
        out_shape=jax.ShapeDtypeStruct((n_phys, L), out_dtype),
        grid=grid,
        in_specs=[
            pl.BlockSpec((tm, FP), lambda i: (i, 0)),      # packed values rows
            pl.BlockSpec((FP, 2 * L), lambda i: (0, 0)),   # fused selection mat
            pl.BlockSpec((L, L), lambda i: (0, 0)),        # block-diag weight
            pl.BlockSpec((2, L), lambda i: (0, 0)),        # phase / bias rows
        ],
        out_specs=pl.BlockSpec((tm, L), lambda i: (i, 0)),
        compiler_params=pltpu.CompilerParams(
            dimension_semantics=("parallel",),
            vmem_limit_bytes=64 << 20),
        cost_estimate=cost,
    )(vals_packed, jnp.asarray(s_sel), w_big, consts)

    # (n_phys, P*G) row-major == (n_phys*P, G): free bitcast reshape.
    out = out_packed.reshape(n_phys * P, G)
    # TODO(synk): when G != C or N % P != 0 the slices below are real copies;
    # prefer consuming the packed (n_phys, L) layout directly inside the same jit.
    if G != C:
        out = out[:, :C]
    if n_phys * P != N:
        out = out[:N]
    return out


def _reference(values, weight, bias, out_dim):
    """Literal pure-JAX transcription of the PyTorch forward (for checking)."""
    C = int(out_dim)
    N = values.shape[0]
    Cp = (C + 1) // 2
    xy = values[:, 2:4]                                     # (N, 2)
    dist = jnp.broadcast_to(xy[None], (Cp, N, 2))           # repeat(Cp,1,1)
    c = jnp.arange(Cp, dtype=jnp.float32)
    div_sin = jnp.exp(-c[::2] * (math.log(10000.0) / Cp))
    div_cos = div_sin if Cp % 2 == 0 else div_sin[:-1]
    pe = jnp.zeros((Cp, N, 2), jnp.float32)
    pe = pe.at[::2].set(jnp.sin(dist[::2] * div_sin[:, None, None]))
    pe = pe.at[1::2].set(jnp.cos(dist[1::2] * div_cos[:, None, None]))
    pe = jnp.transpose(pe, (1, 2, 0)).reshape(N, -1)[:, :C]
    pe = pe / math.sqrt(C / 2.0)
    out = pe @ weight.T + bias
    ratio = (values[:, 1] + 1.0)[:, None] / 2.0
    return out * ratio


if __name__ == "__main__":
    key = jax.random.PRNGKey(0)
    k_val, k_w, k_b, k_val2, k_val3, k_w3, k_b3 = jax.random.split(key, 7)

    out_dim = 32     # C (= inner_dim)
    feat = 4         # values needs at least 4 feature columns

    # Deterministic nn.Linear-style init: U(-1/sqrt(C), 1/sqrt(C))
    bound = 1.0 / math.sqrt(out_dim)
    weight = jax.random.uniform(k_w, (out_dim, out_dim),
                                minval=-bound, maxval=bound, dtype=jnp.float32)
    bias = jax.random.uniform(k_b, (out_dim,),
                              minval=-bound, maxval=bound, dtype=jnp.float32)

    # Tolerances loosened vs pure-f32: the Linear matmul runs bf16 on the MXU
    # (f32 accumulation) and the output is stored in bf16; PE math stays f32.
    tol = dict(atol=2e-2, rtol=2e-2)

    # Small case: single grid step, lane packing, zero-copy unpack (N % P == 0).
    values = jax.random.normal(k_val, (8, feat), dtype=jnp.float32)
    e = jax.block_until_ready(ratio_mul_xy_edge_enc(values, weight, bias, out_dim))
    e_ref = _reference(values, weight, bias, out_dim)
    assert e.shape == (8, out_dim) and e.dtype == jnp.bfloat16
    assert jnp.allclose(e.astype(jnp.float32), e_ref, **tol), "mismatch (small)"

    # Multi-grid-step case with a partial (masked) last output block.
    values2 = jax.random.normal(k_val2, (1000, feat), dtype=jnp.float32)
    e2 = jax.block_until_ready(
        ratio_mul_xy_edge_enc(values2, weight, bias, out_dim, block_rows=64))
    e2_ref = _reference(values2, weight, bias, out_dim)
    assert e2.shape == (1000, out_dim)
    assert jnp.allclose(e2.astype(jnp.float32), e2_ref, **tol), "mismatch (grid)"

    # Non-power-of-two C and ragged N: padded lane groups + tail handling.
    out_dim3 = 24
    bound3 = 1.0 / math.sqrt(out_dim3)
    weight3 = jax.random.uniform(k_w3, (out_dim3, out_dim3),
                                 minval=-bound3, maxval=bound3, dtype=jnp.float32)
    bias3 = jax.random.uniform(k_b3, (out_dim3,),
                               minval=-bound3, maxval=bound3, dtype=jnp.float32)
    values3 = jax.random.normal(k_val3, (13, feat), dtype=jnp.float32)
    e3 = jax.block_until_ready(
        ratio_mul_xy_edge_enc(values3, weight3, bias3, out_dim3))
    e3_ref = _reference(values3, weight3, bias3, out_dim3)
    assert e3.shape == (13, out_dim3)
    assert jnp.allclose(e3.astype(jnp.float32), e3_ref, **tol), "mismatch (ragged)"

    print("KERNEL_OK")
</pallas_src>

<mosaic_0001>
module attributes {stable_mosaic.version = 11 : i64} {
  func.func @_ratio_mul_xy_edge_kernel(%arg0: i32, %arg1: memref<2x16xf32, #tpu.memory_space<vmem>>, %arg2: memref<16x256xf32, #tpu.memory_space<vmem>>, %arg3: memref<128x128xbf16, #tpu.memory_space<vmem>>, %arg4: memref<2x128xf32, #tpu.memory_space<vmem>>, %arg5: memref<2x128xbf16, #tpu.memory_space<vmem>>) attributes {dimension_semantics = [#tpu.dimension_semantics<parallel>], iteration_bounds = array<i64: 1>, scalar_prefetch = 0 : i64, scratch_operands = 0 : i64, tpu.core_type = #tpu.core_type<tc>, window_params = [{transform_indices = @transform_0, window_bounds = array<i64: 2, 16>}, {pipeline_mode = #tpu.pipeline_mode<synchronous>, transform_indices = @transform_1, window_bounds = array<i64: 16, 256>}, {pipeline_mode = #tpu.pipeline_mode<synchronous>, transform_indices = @transform_2, window_bounds = array<i64: 128, 128>}, {pipeline_mode = #tpu.pipeline_mode<synchronous>, transform_indices = @transform_3, window_bounds = array<i64: 2, 128>}, {transform_indices = @transform_4, window_bounds = array<i64: 2, 128>}]} {
    %c0 = arith.constant 0 : index
    %c0_0 = arith.constant 0 : index
    %0 = vector.load %arg1[%c0, %c0_0] : memref<2x16xf32, #tpu.memory_space<vmem>>, vector<2x16xf32>
    %c0_1 = arith.constant 0 : index
    %c0_2 = arith.constant 0 : index
    %1 = vector.load %arg2[%c0_1, %c0_2] : memref<16x256xf32, #tpu.memory_space<vmem>>, vector<16x256xf32>
    %cst = arith.constant dense<0.000000e+00> : vector<2x256xf32>
    %2 = tpu.matmul %0, %1, %cst {dimension_numbers = #tpu.dot_dimension_numbers<[1], [0], [0], [1], [0, 0, 1, 1], [], []>} : vector<2x16xf32>, vector<16x256xf32>, vector<2x256xf32> -> vector<2x256xf32>
    %3 = vector.extract_strided_slice %2 {offsets = [0, 0], sizes = [2, 128], strides = [1, 1]} : vector<2x256xf32> to vector<2x128xf32>
    %4 = vector.extract_strided_slice %2 {offsets = [0, 128], sizes = [2, 128], strides = [1, 1]} : vector<2x256xf32> to vector<2x128xf32>
    %cst_3 = arith.constant 5.000000e-01 : f32
    %5 = vector.broadcast %cst_3 : f32 to vector<2x128xf32>
    %6 = arith.addf %4, %5 : vector<2x128xf32>
    %c0_4 = arith.constant 0 : index
    %c0_5 = arith.constant 0 : index
    %7 = vector.load %arg4[%c0_4, %c0_5] : memref<2x128xf32, #tpu.memory_space<vmem>>, vector<1x128xf32>
    %8 = vector.broadcast %7 : vector<1x128xf32> to vector<2x128xf32>
    %9 = arith.addf %3, %8 : vector<2x128xf32>
    %10 = math.sin %9 : vector<2x128xf32>
    %11 = arith.truncf %10 : vector<2x128xf32> to vector<2x128xbf16>
    %c0_6 = arith.constant 0 : index
    %c0_7 = arith.constant 0 : index
    %12 = vector.load %arg3[%c0_6, %c0_7] : memref<128x128xbf16, #tpu.memory_space<vmem>>, vector<128x128xbf16>
    %cst_8 = arith.constant dense<0.000000e+00> : vector<2x128xf32>
    %13 = tpu.matmul %11, %12, %cst_8 {dimension_numbers = #tpu.dot_dimension_numbers<[1], [0], [0], [1], [0, 0, 1, 1], [], []>} : vector<2x128xbf16>, vector<128x128xbf16>, vector<2x128xf32> -> vector<2x128xf32>
    %c1 = arith.constant 1 : index
    %c0_9 = arith.constant 0 : index
    %14 = vector.load %arg4[%c1, %c0_9] : memref<2x128xf32, #tpu.memory_space<vmem>>, vector<1x128xf32>
    %15 = vector.broadcast %14 : vector<1x128xf32> to vector<2x128xf32>
    %16 = arith.addf %13, %15 : vector<2x128xf32>
    %17 = arith.mulf %16, %6 : vector<2x128xf32>
    %18 = arith.truncf %17 : vector<2x128xf32> to vector<2x128xbf16>
    %c0_10 = arith.constant 0 : index
    %c0_11 = arith.constant 0 : index
    %19 = vector.load %arg5[%c0_10, %c0_11] : memref<2x128xbf16, #tpu.memory_space<vmem>>, vector<2x128xbf16>
    tpu.vector_store %arg5[%c0_10, %c0_11], %18 {strides = array<i32>} : memref<2x128xbf16, #tpu.memory_space<vmem>>, vector<2x128xbf16>,
    return
  }
  func.func @transform_0(%arg0: i32) -> (i32, i32) {
    %c0_i32 = arith.constant 0 : i32
    %c0_i32_0 = arith.constant 0 : i32
    return %arg0, %c0_i32 : i32, i32
  }
  func.func @transform_1(%arg0: i32) -> (i32, i32) {
    %c0_i32 = arith.constant 0 : i32
    %c0_i32_0 = arith.constant 0 : i32
    %c0_i32_1 = arith.constant 0 : i32
    return %c0_i32, %c0_i32_0 : i32, i32
  }
  func.func @transform_2(%arg0: i32) -> (i32, i32) {
    %c0_i32 = arith.constant 0 : i32
    %c0_i32_0 = arith.constant 0 : i32
    %c0_i32_1 = arith.constant 0 : i32
    return %c0_i32, %c0_i32_0 : i32, i32
  }
  func.func @transform_3(%arg0: i32) -> (i32, i32) {
    %c0_i32 = arith.constant 0 : i32
    %c0_i32_0 = arith.constant 0 : i32
    %c0_i32_1 = arith.constant 0 : i32
    return %c0_i32, %c0_i32_0 : i32, i32
  }
  func.func @transform_4(%arg0: i32) -> (i32, i32) {
    %c0_i32 = arith.constant 0 : i32
    %c0_i32_0 = arith.constant 0 : i32
    return %arg0, %c0_i32 : i32, i32
  }
}

</mosaic_0001>

<llo_original>
// kernel: tpu_custom_call.1
$region0: #{tpu_custom_call.1}
  #allocation0 [shape = 'u32[]', space=smem, size = 0x4, offset = 0x4, fixed_abs, tag = 'smem constant byte address 0x4 - core index']
  #allocation1 [shape = 'u32[144,128]{1,0:T(1,128)}', space=vmem, size = 0x12000, scoped, tag = 'internal scratch']
  %s0 = inlined_call_operand.hbm [shape: f32[2,16], index: 0, kind: input, shape index: {}]
  %s1 = inlined_call_operand.hbm [shape: f32[16,256], index: 1, kind: input, shape index: {}]
  %s2 = inlined_call_operand.hbm [shape: bf16[128,128], index: 2, kind: input, shape index: {}]
  %s3 = inlined_call_operand.hbm [shape: f32[2,128], index: 3, kind: input, shape index: {}]
  %s4 = inlined_call_operand.hbm [shape: bf16[2,128], index: 4, kind: output, shape index: {}]
  %s5 = sld [smem:[#allocation0]]
  $region42: #{tpu_custom_call.1} parent=0
    _
  %s7 = ssub.s32 1, %s5
  %s8 = scalar_select 0, %s7, %s5
  $region1: #{tpu_custom_call.1} parent=0
    #allocation2 [shape = 'u8[1024]{0}', space=vmem, size = 0x400, scoped, tag = 'input window, operand 0, single buffered']
    #allocation3 [shape = 's32[1]{0}', space=sflag, size = 0x4, scoped, tag = 'scoped memory for tpu_custom_call.1']
    #allocation4 [shape = 's32[1]{0}', space=sflag, size = 0x4, scoped, tag = 'scoped memory for tpu_custom_call.1']
    #allocation5 [shape = 'u8[16384]{0}', space=vmem, size = 0x4000, scoped, tag = 'input window, operand 1, single buffered']
    #allocation6 [shape = 's32[1]{0}', space=sflag, size = 0x4, scoped, tag = 'scoped memory for tpu_custom_call.1']
    #allocation7 [shape = 'u8[32768]{0}', space=vmem, size = 0x8000, scoped, tag = 'input window, operand 2, single buffered']
    #allocation8 [shape = 'u8[1024]{0}', space=vmem, size = 0x400, scoped, tag = 'input window, operand 3, single buffered']
    #allocation9 [shape = 's32[1]{0}', space=sflag, size = 0x4, scoped, tag = 'scoped memory for tpu_custom_call.1']
    #allocation10 [shape = 'u8[512]{0}', space=vmem, size = 0x400, scoped, tag = 'output window, operand 0, single buffered']
    %9 = vsyncpa [#allocation3], 0
    %10 = vsyncpa [#allocation6], 0
    %11 = vsyncpa [#allocation9], 0
    %12 = vsyncpa [#allocation4], 0
    // Predicated region
    $region2: #{tpu_custom_call.1} parent=1 // pred_check
      _
    $region3: #{tpu_custom_call.1} parent=1 // pred_check_branch
      %14 = sbr.rel (0) target = $region5
    $region4: #{tpu_custom_call.1} parent=1 // pred_region
      %s16 = ssub.s32 32, 32
      %17 = vsyncadd [#allocation3], %s16
      %s19 = sshll.u32 [#allocation2], 4
      %s20 = int_to_ptr.vmem [resolvable:$true] %s19
      %22 = dma.hbm_to_vmem [thread:$0]  %s0, 32, %s20, [#allocation3]
    $region5: #{tpu_custom_call.1} parent=1 // pred_fallthru
      _
    // Predicated region
    $region6: #{tpu_custom_call.1} parent=1 // pred_check
      _
    $region7: #{tpu_custom_call.1} parent=1 // pred_check_branch
      %24 = sbr.rel (0) target = $region9
    $region8: #{tpu_custom_call.1} parent=1 // pred_region
      %s26 = ssub.s32 512, 512
      %27 = vsyncadd [#allocation6], %s26
      %s28 = sshll.u32 [#allocation5], 4
      %s29 = int_to_ptr.vmem [resolvable:$true] %s28
      %34 = dma.hbm_to_vmem [thread:$0]  %s1, 512, %s29, [#allocation6], 256, 256, 16
    $region9: #{tpu_custom_call.1} parent=1 // pred_fallthru
      _
    // Predicated region
    $region10: #{tpu_custom_call.1} parent=1 // pred_check
      _
    $region11: #{tpu_custom_call.1} parent=1 // pred_check_branch
      %36 = sbr.rel (0) target = $region13
    $region12: #{tpu_custom_call.1} parent=1 // pred_region
      %s38 = ssub.s32 1024, 1024
      %39 = vsyncadd [#allocation6], %s38
      %s40 = sshll.u32 [#allocation7], 4
      %s41 = int_to_ptr.vmem [resolvable:$true] %s40
      %46 = dma.hbm_to_vmem [thread:$0]  %s2, 1024, %s41, [#allocation6], 64, 64, 4
    $region13: #{tpu_custom_call.1} parent=1 // pred_fallthru
      _
    // Predicated region
    $region14: #{tpu_custom_call.1} parent=1 // pred_check
      _
    $region15: #{tpu_custom_call.1} parent=1 // pred_check_branch
      %48 = sbr.rel (0) target = $region17
    $region16: #{tpu_custom_call.1} parent=1 // pred_region
      %s50 = ssub.s32 32, 32
      %51 = vsyncadd [#allocation9], %s50
      %s53 = sshll.u32 [#allocation8], 4
      %s54 = int_to_ptr.vmem [resolvable:$true] %s53
      %56 = dma.hbm_to_vmem [thread:$0]  %s3, 32, %s54, [#allocation9]
    $region17: #{tpu_custom_call.1} parent=1 // pred_fallthru
      _
    // Predicated region
    $region18: #{tpu_custom_call.1} parent=1 // pred_check
      _
    $region19: #{tpu_custom_call.1} parent=1 // pred_check_branch
      %58 = sbr.rel (0) target = $region21
    $region20: #{tpu_custom_call.1} parent=1 // pred_region
      %59 = dma.done [#allocation3], 32
    $region21: #{tpu_custom_call.1} parent=1 // pred_fallthru
      _
    // Predicated region
    $region22: #{tpu_custom_call.1} parent=1 // pred_check
      _
    $region23: #{tpu_custom_call.1} parent=1 // pred_check_branch
      %61 = sbr.rel (0) target = $region25
    $region24: #{tpu_custom_call.1} parent=1 // pred_region
      %62 = dma.done [#allocation6], 512
    $region25: #{tpu_custom_call.1} parent=1 // pred_fallthru
      _
    // Predicated region
    $region26: #{tpu_custom_call.1} parent=1 // pred_check
      _
    $region27: #{tpu_custom_call.1} parent=1 // pred_check_branch
      %64 = sbr.rel (0) target = $region29
    $region28: #{tpu_custom_call.1} parent=1 // pred_region
      %65 = dma.done [#allocation6], 1024
    $region29: #{tpu_custom_call.1} parent=1 // pred_fallthru
      _
    // Predicated region
    $region30: #{tpu_custom_call.1} parent=1 // pred_check
      _
    $region31: #{tpu_custom_call.1} parent=1 // pred_check_branch
      %67 = sbr.rel (0) target = $region33
    $region32: #{tpu_custom_call.1} parent=1 // pred_region
      %68 = dma.done [#allocation9], 32
    $region33: #{tpu_custom_call.1} parent=1 // pred_fallthru
      _
    %v70 = vld [vmem:[#allocation2] sm:$0x3]
    %v71 = vld [vmem:[#allocation5] sm:$0xff]
    %v72 = vld [vmem:[#allocation5 + $0x8] sm:$0xff]
    %v73 = vld [vmem:[#allocation5 + $0x10] sm:$0xff]
    %v74 = vld [vmem:[#allocation5 + $0x18] sm:$0xff]
    %vm75 = vcmask 130048
    %v77 = vsel %vm75, %v70, 0
    %79 = vmatprep.subr.mxu0 %v72
    %80 = vmatpush1.msra.mxu0 %v71
    %81 = vmatprep.subr.mxu0 %v74
    %82 = vmatpush1.msra.mxu0 %v73
    %83 = vmatprep.subr.mxu0 0.0
    %84 = vmatpush1.msra.mxu0 0.0
    %85 = vmatprep.subr.mxu0 0.0
    %86 = vmatpush1.msra.mxu0 0.0
    %87 = vmatprep.subr.mxu0 0.0
    %88 = vmatpush1.msra.mxu0 0.0
    %89 = vmatprep.subr.mxu0 0.0
    %90 = vmatpush1.msra.mxu0 0.0
    %91 = vmatprep.subr.mxu0 0.0
    %92 = vmatpush1.msra.mxu0 0.0
    %93 = vmatprep.subr.mxu0 0.0
    %94 = vmatpush1.msra.mxu0 0.0
    %95 = vmatprep.subr.mxu0 0.0
    %96 = vmatpush1.msra.mxu0 0.0
    %97 = vmatprep.subr.mxu0 0.0
    %98 = vmatpush1.msra.mxu0 0.0
    %99 = vmatprep.subr.mxu0 0.0
    %100 = vmatpush1.msra.mxu0 0.0
    %101 = vmatprep.subr.mxu0 0.0
    %102 = vmatpush1.msra.mxu0 0.0
    %103 = vmatprep.subr.mxu0 0.0
    %104 = vmatpush1.msra.mxu0 0.0
    %105 = vmatprep.subr.mxu0 0.0
    %106 = vmatpush1.msra.mxu0 0.0
    %107 = vmatprep.subr.mxu0 0.0
    %108 = vmatpush1.msra.mxu0 0.0
    %109 = vmatprep.subr.mxu0 0.0
    %110 = vmatpush1.msra.mxu0 0.0
    %111 = vmatprep.subr.mxu0 0.0
    %112 = vmatpush1.msra.mxu0 0.0
    %113 = vmatprep.subr.mxu0 0.0
    %114 = vmatpush1.msra.mxu0 0.0
    %115 = vmatprep.subr.mxu0 0.0
    %116 = vmatpush1.msra.mxu0 0.0
    %117 = vmatprep.subr.mxu0 0.0
    %118 = vmatpush1.msra.mxu0 0.0
    %119 = vmatprep.subr.mxu0 0.0
    %120 = vmatpush1.msra.mxu0 0.0
    %121 = vmatprep.subr.mxu0 0.0
    %122 = vmatpush1.msra.mxu0 0.0
    %123 = vmatprep.subr.mxu0 0.0
    %124 = vmatpush1.msra.mxu0 0.0
    %125 = vmatprep.subr.mxu0 0.0
    %126 = vmatpush1.msra.mxu0 0.0
    %127 = vmatprep.subr.mxu0 0.0
    %128 = vmatpush1.msra.mxu0 0.0
    %129 = vmatprep.subr.mxu0 0.0
    %130 = vmatpush1.msra.mxu0 0.0
    %131 = vmatprep.subr.mxu0 0.0
    %132 = vmatpush1.msra.mxu0 0.0
    %133 = vmatprep.subr.mxu0 0.0
    %134 = vmatpush1.msra.mxu0 0.0
    %135 = vmatprep.subr.mxu0 0.0
    %136 = vmatpush1.msra.mxu0 0.0
    %137 = vmatprep.subr.mxu0 0.0
    %138 = vmatpush1.msra.mxu0 0.0
    %139 = vmatprep.subr.mxu0 0.0
    %140 = vmatpush1.msra.mxu0 0.0
    %141 = vmatprep.subr.mxu0 0.0
    %142 = vmatpush1.msra.mxu0 0.0
    %143 = vmatprep.mubr.f32.mxu0 0.0
    %144 = vmatmul.mubr.f32.gmra.mrb[0].mxu0 %v77
    %v145 = vpop.f32.mrb[0].mxu0
    %v146 = vadd.f32 0.0, %v145
    %v147 = vpop.f32.mrb[0].mxu0
    %v148 = vadd.f32 0.0, %v147
    %149 = vdwg.mxu0
    %v150 = vadd.f32 %v148, 0.5
    %v151 = vld [vmem:[#allocation8] sm:$0x1]
    %v152 = vlaneseq
    %v153 = vshrl.u32 %v152, 7
    %v154 = vsub.s32 0, %v153
    %v155 = vrot.slane %v151, %v154
    %v156 = vadd.f32 %v146, %v155
    %v157 = vand.u32 2147483647, %v156
    %vm158 = vcmp.le.f32.partialorder %v157, 0.7853982
    %vm159 = vcmp.lt.s32.totalorder %v156, 0
    %v160 = vand.u32 %v156, 2139095040
    %v161 = vshrl.u32 %v160, 23
    %v162 = vsub.s32 %v161, 127
    %v163 = vand.u32 2147483647, %v156
    %v164 = vand.u32 %v163, 8388607
    %v165 = vor.u32 %v164, 8388608
    %v166 = vsub.s32 0, %v165
    %v167 = vadd.s32 %v162, 1
    %vm168 = vcmp.gt.s32.totalorder %v167, 0
    %v169 = vsel %vm168, %v167, 0
    %v170 = vshrl.u32 %v169, 5
    %v171 = vand.u32 %v169, 31
    %v172 = vsub.s32 32, %v171
    %v173 = vshrl.u32 683565275, %v172
    %v174 = vshll.u32 683565275, %v171
    %v175 = vshrl.u32 2475754826, %v172
    %v176 = vor.u32 %v174, %v175
    %v177 = vshll.u32 2475754826, %v171
    %v178 = vshrl.u32 2131351028, %v172
    %v179 = vor.u32 %v177, %v178
    %v180 = vshll.u32 2131351028, %v171
    %v181 = vshrl.u32 2102212464, %v172
    %v182 = vor.u32 %v180, %v181
    %v183 = vshll.u32 2102212464, %v171
    %v184 = vshrl.u32 920167782, %v172
    %v185 = vor.u32 %v183, %v184
    %v186 = vshll.u32 920167782, %v171
    %v187 = vshrl.u32 1326507024, %v172
    %v188 = vor.u32 %v186, %v187
    %vm189 = vcmp.lt.s32.totalorder %v170, 1
    %vm190 = vcmp.lt.s32.totalorder %v170, 2
    %vm191 = vcmp.lt.s32.totalorder %v170, 3
    %vm192 = vcmp.lt.s32.totalorder %v170, 4
    %v193 = vsel %vm189, %v173, %v176
    %v194 = vsel %vm192, %v182, 2102212464
    %v195 = vsel %vm191, %v179, %v194
    %v196 = vsel %vm190, %v193, %v195
    %v197 = vsel %vm189, %v176, %v179
    %v198 = vsel %vm192, %v185, 920167782
    %v199 = vsel %vm191, %v182, %v198
    %v200 = vsel %vm190, %v197, %v199
    %v201 = vsel %vm189, %v179, %v182
    %v202 = vsel %vm192, %v188, 1326507024
    %v203 = vsel %vm191, %v185, %v202
    %v204 = vsel %vm190, %v201, %v203
    %v205 = vshll.u32 %v165, 8
    %v206 = vmul.u32.u64.compose %v205, %v204
    %v207 = vextract.low.u32 %v206
    %v208 = vextract.high.u32 %v206
    %v209 = vmul.u32.u64.compose %v205, %v200
    %v210 = vextract.low.u32 %v209
    %v211 = vextract.high.u32 %v209
    %v212 = vmul.u32 %v205, %v196
    %v213 = vadd.s32 %v208, %v210
    %vm214 = vc.u32 %v208, %v210
    %v215 = vadd.s32 %v211, 1
    %v216 = vsel %vm214, %v215, %v211
    %v217 = vadd.s32 %v212, %v216
    %v218 = vadd.s32 %v217, 536870912
    %v219 = vshrl.u32 %v218, 30
    %v220 = vshll.u32 %v219, 30
    %v221 = vsub.s32 %v217, %v220
    %vm222 = vcmp.lt.s32.totalorder %v221, 0
    %v223 = vsub.s32 0, %v221
    %v224 = vsel %vm222, %v223, %v221
    %v225 = vclz %v224
    %v226 = vsub.s32 %v225, 2
    %vm227 = vcmp.gt.s32.totalorder 0, %v226
    %v228 = vsel %vm227, 0, %v226
    %v229 = vsub.s32 32, %v228
    %v230 = vshll.u32 %v221, %v228
    %v231 = vshrl.u32 %v213, %v229
    %v232 = vor.u32 %v230, %v231
    %v233 = vsub.s32 4294967266, %v228
    %v234 = vadd.s32 %v233, 127
    %v235 = vshll.u32 %v234, 23
    %v236 = vor.u32 4788187, %v235
    %v237 = vand.u32 2147483647, %v236
    %v239 = vcvt.s32.f32 %v232
    %v240 = vmul.f32 %v239, %v237
    %v241 = vxor.u32 %v240, 2147483648
    %v242 = vsel %vm159, %v241, %v240
    %v243 = vsub.s32 4, %v219
    %v244 = vsel %vm159, %v243, %v219
    %v245 = vsel %vm158, %v156, %v242
    %v246 = vsel %vm158, 0, %v244
    %v247 = vcosq.f32.pop %v245
    %v248 = vsinq.f32.pop %v245
    %vm249 = vweird.f32 %v156
    %v250 = vadd.s32 %v246, 3
    %v251 = vand.u32 %v250, 3
    %vm252 = vcmp.lt.s32.totalorder %v251, 2
    %vm253 = vcmp.eq.s32.totalorder %v251, 0
    %v254 = vxor.u32 %v248, 2147483648
    %v255 = vsel %vm253, %v247, %v254
    %vm256 = vcmp.eq.s32.totalorder %v251, 2
    %v257 = vxor.u32 %v247, 2147483648
    %v258 = vsel %vm256, %v257, %v248
    %v259 = vsel %vm252, %v255, %v258
    %v260 = vsel %vm249, nan, %v259
    %v261 = vpack.c.bf16 %v260, %v260
    %v262 = vld [vmem:[#allocation7] sm:$0xf]
    %v263 = vld [vmem:[#allocation7 + $0x4] sm:$0xf]
    %v264 = vld [vmem:[#allocation7 + $0x8] sm:$0xf]
    %v265 = vld [vmem:[#allocation7 + $0xc] sm:$0xf]
    %v266 = vld [vmem:[#allocation7 + $0x10] sm:$0xf]
    %v267 = vld [vmem:[#allocation7 + $0x14] sm:$0xf]
    %v268 = vld [vmem:[#allocation7 + $0x18] sm:$0xf]
    %v269 = vld [vmem:[#allocation7 + $0x1c] sm:$0xf]
    %v270 = vld [vmem:[#allocation7 + $0x20] sm:$0xf]
    %v271 = vld [vmem:[#allocation7 + $0x24] sm:$0xf]
    %v272 = vld [vmem:[#allocation7 + $0x28] sm:$0xf]
    %v273 = vld [vmem:[#allocation7 + $0x2c] sm:$0xf]
    %v274 = vld [vmem:[#allocation7 + $0x30] sm:$0xf]
    %v275 = vld [vmem:[#allocation7 + $0x34] sm:$0xf]
    %v276 = vld [vmem:[#allocation7 + $0x38] sm:$0xf]
    %v277 = vld [vmem:[#allocation7 + $0x3c] sm:$0xf]
    %v278 = vld [vmem:[#allocation8 + $0x1] sm:$0x1]
    %v279 = vlaneseq
    %v280 = vshrl.u32 %v279, 7
    %v281 = vsub.s32 0, %v280
    %v282 = vrot.slane %v278, %v281
    %v299 = vunpack.c.l.b16 %v262
    %v300 = vunpack.c.l.b16 %v263
    %v301 = vunpack.c.l.b16 %v264
    %v302 = vunpack.c.l.b16 %v265
    %v303 = vunpack.c.l.b16 %v266
    %v304 = vunpack.c.l.b16 %v267
    %v305 = vunpack.c.l.b16 %v268
    %v306 = vunpack.c.l.b16 %v269
    %v307 = vunpack.c.l.b16 %v270
    %v308 = vunpack.c.l.b16 %v271
    %v309 = vunpack.c.l.b16 %v272
    %v310 = vunpack.c.l.b16 %v273
    %v311 = vunpack.c.l.b16 %v274
    %v312 = vunpack.c.l.b16 %v275
    %v313 = vunpack.c.l.b16 %v276
    %v314 = vunpack.c.l.b16 %v277
    %v315 = vpack.c.b16 %v300, %v299
    %v316 = vpack.c.b16 %v302, %v301
    %v317 = vpack.c.b16 %v304, %v303
    %v318 = vpack.c.b16 %v306, %v305
    %v319 = vpack.c.b16 %v308, %v307
    %v320 = vpack.c.b16 %v310, %v309
    %v321 = vpack.c.b16 %v312, %v311
    %v322 = vpack.c.b16 %v314, %v313
    %331 = vmatprep.subr.bf16.mxu0 0
    %332 = vmatpush1.bf16.msra.mxu0 %v315
    %333 = vmatprep.subr.bf16.mxu0 0
    %334 = vmatpush1.bf16.msra.mxu0 %v316
    %335 = vmatprep.subr.bf16.mxu0 0
    %336 = vmatpush1.bf16.msra.mxu0 %v317
    %337 = vmatprep.subr.bf16.mxu0 0
    %338 = vmatpush1.bf16.msra.mxu0 %v318
    %339 = vmatprep.subr.bf16.mxu0 0
    %340 = vmatpush1.bf16.msra.mxu0 %v319
    %341 = vmatprep.subr.bf16.mxu0 0
    %342 = vmatpush1.bf16.msra.mxu0 %v320
    %343 = vmatprep.subr.bf16.mxu0 0
    %344 = vmatpush1.bf16.msra.mxu0 %v321
    %345 = vmatprep.subr.bf16.mxu0 0
    %346 = vmatpush1.bf16.msra.mxu0 %v322
    %347 = vmatprep.subr.bf16.mxu0 0
    %348 = vmatpush1.bf16.msra.mxu0 0
    %349 = vmatprep.subr.bf16.mxu0 0
    %350 = vmatpush1.bf16.msra.mxu0 0
    %351 = vmatprep.subr.bf16.mxu0 0
    %352 = vmatpush1.bf16.msra.mxu0 0
    %353 = vmatprep.subr.bf16.mxu0 0
    %354 = vmatpush1.bf16.msra.mxu0 0
    %355 = vmatprep.subr.bf16.mxu0 0
    %356 = vmatpush1.bf16.msra.mxu0 0
    %357 = vmatprep.subr.bf16.mxu0 0
    %358 = vmatpush1.bf16.msra.mxu0 0
    %359 = vmatprep.subr.bf16.mxu0 0
    %360 = vmatpush1.bf16.msra.mxu0 0
    %361 = vmatprep.subr.bf16.mxu0 0
    %362 = vmatpush1.bf16.msra.mxu0 0
    %363 = vmatprep.mubr.bf16.mxu0 0
    %364 = vmatmul.mubr.bf16.gmra.mrb[0].mxu0 %v261
    %v365 = vpop.f32.mrb[0].mxu0
    %v366 = vadd.f32 %v282, %v365
    %v367 = vpop.f32.mrb[0].mxu0
    %v368 = vpop.f32.mrb[0].mxu0
    %v369 = vpop.f32.mrb[0].mxu0
    %370 = vdwg.mxu0
    %v371 = vmul.f32 %v366, %v150
    %v372 = vpack.c.bf16 %v371, %v371
    %373 = vst [vmem:[#allocation10] sm:$0x1] %v372
    // Predicated region
    $region34: #{tpu_custom_call.1} parent=1 // pred_check
      _
    $region35: #{tpu_custom_call.1} parent=1 // pred_check_branch
      %375 = sbr.rel (0) target = $region37
    $region36: #{tpu_custom_call.1} parent=1 // pred_region
      %s377 = ssub.s32 16, 16
      %378 = vsyncadd [#allocation4], %s377
      %s380 = sshll.u32 [#allocation10], 4
      %s381 = int_to_ptr.vmem [resolvable:$true] %s380
      %383 = dma.vmem_to_hbm [thread:$0]  %s381, 16, %s4, [#allocation4]
    $region37: #{tpu_custom_call.1} parent=1 // pred_fallthru
      _
    // Predicated region
    $region38: #{tpu_custom_call.1} parent=1 // pred_check
      _
    $region39: #{tpu_custom_call.1} parent=1 // pred_check_branch
      %385 = sbr.rel (0) target = $region41
    $region40: #{tpu_custom_call.1} parent=1 // pred_region
      %386 = dma.done [#allocation4], 16
    $region41: #{tpu_custom_call.1} parent=1 // pred_fallthru
      _
    %387 = vsyncpa [#allocation3], 1
    %388 = vsyncpa [#allocation6], 1
    %389 = vsyncpa [#allocation9], 1
    %390 = vsyncpa [#allocation4], 1

</llo_original>
